<compile_context>
chip_gen: v5e
topology: v5e:2x2
jax: 0.10.0
libtpu: 0.0.40
codegen_flags: <defaults>
</compile_context>

<pallas_src>
from functools import partial

import jax
import jax.numpy as jnp
from jax.experimental import pallas as pl
from jax.experimental.pallas import tpu as pltpu

LANE = 128            # TPU lane width; pad hidden/action dims to this.
MAX_TILE_B = 1024     # max rows per grid step (HBM-bound: big tiles win).
MIN_SPLIT_ROWS = 512  # batches >= this get >=2 grid steps (v7x 2-TC split).


def _round_up(n, m):
    return ((n + m - 1) // m) * m


def _pad2(a, shape):
    """Zero-pad a 2-D array up to `shape` (no-op if already that shape)."""
    pr = shape[0] - a.shape[0]
    pc = shape[1] - a.shape[1]
    if pr == 0 and pc == 0:
        return a
    return jnp.pad(a, ((0, pr), (0, pc)))


def prepare_params(w1, b1, w2, b2, w3, b3):
    """One-time weight prep: pad feature dims to 128 lanes, cast W to bf16.

    Call this once at init / after each optimizer step; pass the result to
    dqn_forward so the per-call path contains no pad/cast ops.
    """
    state_dim, hidden_dim = w1.shape
    num_actions = w3.shape[1]
    h_p = _round_up(hidden_dim, LANE)
    a_p = _round_up(num_actions, LANE)

    w1_p = _pad2(w1, (state_dim, h_p)).astype(jnp.bfloat16)   # K stays = state_dim
    w2_p = _pad2(w2, (h_p, h_p)).astype(jnp.bfloat16)
    w3_p = _pad2(w3, (h_p, a_p)).astype(jnp.bfloat16)
    b1_p = _pad2(b1, (1, h_p)).astype(jnp.float32)
    b2_p = _pad2(b2, (1, h_p)).astype(jnp.float32)
    b3_p = _pad2(b3, (1, a_p)).astype(jnp.float32)
    return (w1_p, b1_p, w2_p, b2_p, w3_p, b3_p), num_actions


def _choose_batch_tiling(batch):
    """Pick (tile_b, b_p, n_steps) with minimal padding and >=2 steps for
    large batches so v7x's two TensorCores both get work."""
    b8 = _round_up(batch, 8)
    n_steps = pl.cdiv(b8, MAX_TILE_B)
    if b8 >= MIN_SPLIT_ROWS and n_steps < 2:
        n_steps = 2
    tile_b = _round_up(pl.cdiv(b8, n_steps), 8)
    b_p = tile_b * n_steps
    return tile_b, b_p, n_steps


def _dqn_kernel(x_ref, w1_ref, b1_ref, w2_ref, b2_ref, w3_ref, b3_ref, out_ref):
    """Fused 3-layer MLP forward for one batch tile.

    x arrives f32 (narrow K=state_dim stream) and is cast to bf16 in-kernel;
    weights are bf16; accumulation, bias add and ReLU are f32.
    """
    x = x_ref[...].astype(jnp.bfloat16)

    # fc1 + ReLU   (K = state_dim, unpadded)
    h1 = jnp.dot(x, w1_ref[...], preferred_element_type=jnp.float32)
    h1 = jnp.maximum(h1 + b1_ref[...], 0.0)

    # fc2 + ReLU
    h2 = jnp.dot(h1.astype(jnp.bfloat16), w2_ref[...],
                 preferred_element_type=jnp.float32)
    h2 = jnp.maximum(h2 + b2_ref[...], 0.0)

    # fc3 (no activation)
    q = jnp.dot(h2.astype(jnp.bfloat16), w3_ref[...],
                preferred_element_type=jnp.float32)
    out_ref[...] = (q + b3_ref[...]).astype(out_ref.dtype)


@partial(jax.jit, static_argnames=("out_dtype",))
def dqn_forward(x, params, out_dtype=jnp.float32):
    """Forward pass. `params` must come from prepare_params().

    Set out_dtype=jnp.bfloat16 to halve the (dominant) output HBM stream when
    the Q-values only feed argmax action selection.
    """
    w1_p, b1_p, w2_p, b2_p, w3_p, b3_p = params
    batch, state_dim = x.shape
    h_p = w1_p.shape[1]
    a_p = w3_p.shape[1]

    tile_b, b_p, n_steps = _choose_batch_tiling(batch)

    # Only the batch dim of x may need padding (feature dim stays unpadded).
    x_p = x if b_p == batch else jnp.pad(x, ((0, b_p - batch), (0, 0)))
    x_p = x_p.astype(jnp.float32)

    out_bytes = jnp.dtype(out_dtype).itemsize
    cost = pl.CostEstimate(
        flops=2 * b_p * (state_dim * h_p + h_p * h_p + h_p * a_p),
        transcendentals=0,
        bytes_accessed=(
            b_p * state_dim * 4                             # f32 x in
            + (w1_p.size + w2_p.size + w3_p.size) * 2       # bf16 weights
            + (b1_p.size + b2_p.size + b3_p.size) * 4       # f32 biases
            + b_p * a_p * out_bytes                         # output
        ),
    )

    out_p = pl.pallas_call(
        _dqn_kernel,
        out_shape=jax.ShapeDtypeStruct((b_p, a_p), out_dtype),
        grid_spec=pl.GridSpec(
            grid=(n_steps,),
            in_specs=[
                # Activations: new row-tile per grid step, K = state_dim
                # (full last-dim block -> legal even though 12 % 128 != 0).
                pl.BlockSpec((tile_b, state_dim), lambda i: (i, 0)),
                # Weights / biases: constant block index -> resident in VMEM.
                pl.BlockSpec((state_dim, h_p), lambda i: (0, 0)),
                pl.BlockSpec((1, h_p), lambda i: (0, 0)),
                pl.BlockSpec((h_p, h_p), lambda i: (0, 0)),
                pl.BlockSpec((1, h_p), lambda i: (0, 0)),
                pl.BlockSpec((h_p, a_p), lambda i: (0, 0)),
                pl.BlockSpec((1, a_p), lambda i: (0, 0)),
            ],
            out_specs=pl.BlockSpec((tile_b, a_p), lambda i: (i, 0)),
        ),
        compiler_params=pltpu.CompilerParams(
            dimension_semantics=("parallel",),      # batch splits across v7x TCs
            vmem_limit_bytes=32 * 1024 * 1024,      # explicit (v5e default is 16 MiB)
        ),
        cost_estimate=cost,
    )(x_p, w1_p, b1_p, w2_p, b2_p, w3_p, b3_p)

    # Strip batch / action padding.  (A consumer that just does argmax could
    # index the padded buffer directly and skip this slice.)
    return out_p[:batch, : w3_p.shape[1]]


def init_linear_params(key, in_features, out_features):
    """Init mimicking torch.nn.Linear default U(-1/sqrt(in), 1/sqrt(in)).

    Returns W with shape (in_features, out_features) (transposed vs. torch)
    and b with shape (1, out_features).
    """
    kw, kb = jax.random.split(key)
    bound = 1.0 / jnp.sqrt(jnp.float32(in_features))
    w = jax.random.uniform(kw, (in_features, out_features), jnp.float32, -bound, bound)
    b = jax.random.uniform(kb, (1, out_features), jnp.float32, -bound, bound)
    return w, b


def reference_forward_f32(x, w1, b1, w2, b2, w3, b3):
    h1 = jnp.maximum(x @ w1 + b1, 0.0)
    h2 = jnp.maximum(h1 @ w2 + b2, 0.0)
    return h2 @ w3 + b3


def reference_forward_bf16(x, w1, b1, w2, b2, w3, b3):
    """Same numerics path as the kernel (bf16 matmul inputs, f32 accum/epilogue)."""
    bf = jnp.bfloat16
    h1 = jnp.dot(x.astype(bf), w1.astype(bf), preferred_element_type=jnp.float32)
    h1 = jnp.maximum(h1 + b1, 0.0)
    h2 = jnp.dot(h1.astype(bf), w2.astype(bf), preferred_element_type=jnp.float32)
    h2 = jnp.maximum(h2 + b2, 0.0)
    q = jnp.dot(h2.astype(bf), w3.astype(bf), preferred_element_type=jnp.float32)
    return q + b3


if __name__ == "__main__":
    # Small shapes consistent with the module: state_dim=12, hidden_dim=120,
    # num_actions=6, batch=8.
    batch, state_dim, hidden_dim, num_actions = 8, 12, 120, 6

    key = jax.random.PRNGKey(0)
    kx, k1, k2, k3 = jax.random.split(key, 4)

    x = jax.random.normal(kx, (batch, state_dim), jnp.float32)
    w1, b1 = init_linear_params(k1, state_dim, hidden_dim)
    w2, b2 = init_linear_params(k2, hidden_dim, hidden_dim)
    w3, b3 = init_linear_params(k3, hidden_dim, num_actions)

    # One-time weight prep (padding + bf16 cast) hoisted out of the call path.
    params, n_act = prepare_params(w1, b1, w2, b2, w3, b3)

    out = dqn_forward(x, params)
    out = jax.block_until_ready(out)
    out = out[:, :n_act]

    assert out.shape == (batch, num_actions), out.shape

    # Tight check vs. a reference with the same bf16-matmul numerics.
    ref_bf16 = reference_forward_bf16(x, w1, b1, w2, b2, w3, b3)
    assert jnp.allclose(out, ref_bf16, atol=1e-2, rtol=1e-2)

    # Loose check vs. the pure-f32 PyTorch-equivalent forward.
    # TODO(synk): bf16 matmul inputs deviate from the f32 torch reference;
    # acceptable for DQN action selection, revisit if Q-values feed a
    # high-precision TD loss.
    ref_f32 = reference_forward_f32(x, w1, b1, w2, b2, w3, b3)
    assert jnp.allclose(out, ref_f32, atol=5e-2, rtol=5e-2)

    print("KERNEL_OK")
</pallas_src>

<mosaic_0001>
module attributes {stable_mosaic.version = 11 : i64} {
  func.func @_dqn_kernel(%arg0: i32, %arg1: memref<8x12xf32, #tpu.memory_space<vmem>>, %arg2: memref<12x128xbf16, #tpu.memory_space<vmem>>, %arg3: memref<1x128xf32, #tpu.memory_space<vmem>>, %arg4: memref<128x128xbf16, #tpu.memory_space<vmem>>, %arg5: memref<1x128xf32, #tpu.memory_space<vmem>>, %arg6: memref<128x128xbf16, #tpu.memory_space<vmem>>, %arg7: memref<1x128xf32, #tpu.memory_space<vmem>>, %arg8: memref<8x128xf32, #tpu.memory_space<vmem>>) attributes {dimension_semantics = [#tpu.dimension_semantics<parallel>], iteration_bounds = array<i64: 1>, scalar_prefetch = 0 : i64, scratch_operands = 0 : i64, tpu.core_type = #tpu.core_type<tc>, window_params = [{transform_indices = @transform_0, window_bounds = array<i64: 8, 12>}, {pipeline_mode = #tpu.pipeline_mode<synchronous>, transform_indices = @transform_1, window_bounds = array<i64: 12, 128>}, {pipeline_mode = #tpu.pipeline_mode<synchronous>, transform_indices = @transform_2, window_bounds = array<i64: 1, 128>}, {pipeline_mode = #tpu.pipeline_mode<synchronous>, transform_indices = @transform_3, window_bounds = array<i64: 128, 128>}, {pipeline_mode = #tpu.pipeline_mode<synchronous>, transform_indices = @transform_4, window_bounds = array<i64: 1, 128>}, {pipeline_mode = #tpu.pipeline_mode<synchronous>, transform_indices = @transform_5, window_bounds = array<i64: 128, 128>}, {pipeline_mode = #tpu.pipeline_mode<synchronous>, transform_indices = @transform_6, window_bounds = array<i64: 1, 128>}, {transform_indices = @transform_7, window_bounds = array<i64: 8, 128>}]} {
    %c0 = arith.constant 0 : index
    %c0_0 = arith.constant 0 : index
    %0 = vector.load %arg1[%c0, %c0_0] : memref<8x12xf32, #tpu.memory_space<vmem>>, vector<8x12xf32>
    %1 = arith.truncf %0 : vector<8x12xf32> to vector<8x12xbf16>
    %c0_1 = arith.constant 0 : index
    %c0_2 = arith.constant 0 : index
    %2 = vector.load %arg2[%c0_1, %c0_2] : memref<12x128xbf16, #tpu.memory_space<vmem>>, vector<12x128xbf16>
    %cst = arith.constant dense<0.000000e+00> : vector<8x128xf32>
    %3 = tpu.matmul %1, %2, %cst {dimension_numbers = #tpu.dot_dimension_numbers<[1], [0], [0], [1], [0, 0, 1, 1], [], []>} : vector<8x12xbf16>, vector<12x128xbf16>, vector<8x128xf32> -> vector<8x128xf32>
    %c0_3 = arith.constant 0 : index
    %c0_4 = arith.constant 0 : index
    %4 = vector.load %arg3[%c0_3, %c0_4] : memref<1x128xf32, #tpu.memory_space<vmem>>, vector<1x128xf32>
    %5 = vector.broadcast %4 : vector<1x128xf32> to vector<8x128xf32>
    %6 = arith.addf %3, %5 : vector<8x128xf32>
    %cst_5 = arith.constant 0.000000e+00 : f32
    %7 = vector.broadcast %cst_5 : f32 to vector<8x128xf32>
    %8 = arith.maximumf %6, %7 : vector<8x128xf32>
    %9 = arith.truncf %8 : vector<8x128xf32> to vector<8x128xbf16>
    %c0_6 = arith.constant 0 : index
    %c0_7 = arith.constant 0 : index
    %10 = vector.load %arg4[%c0_6, %c0_7] : memref<128x128xbf16, #tpu.memory_space<vmem>>, vector<128x128xbf16>
    %cst_8 = arith.constant dense<0.000000e+00> : vector<8x128xf32>
    %11 = tpu.matmul %9, %10, %cst_8 {dimension_numbers = #tpu.dot_dimension_numbers<[1], [0], [0], [1], [0, 0, 1, 1], [], []>} : vector<8x128xbf16>, vector<128x128xbf16>, vector<8x128xf32> -> vector<8x128xf32>
    %c0_9 = arith.constant 0 : index
    %c0_10 = arith.constant 0 : index
    %12 = vector.load %arg5[%c0_9, %c0_10] : memref<1x128xf32, #tpu.memory_space<vmem>>, vector<1x128xf32>
    %13 = vector.broadcast %12 : vector<1x128xf32> to vector<8x128xf32>
    %14 = arith.addf %11, %13 : vector<8x128xf32>
    %cst_11 = arith.constant 0.000000e+00 : f32
    %15 = vector.broadcast %cst_11 : f32 to vector<8x128xf32>
    %16 = arith.maximumf %14, %15 : vector<8x128xf32>
    %17 = arith.truncf %16 : vector<8x128xf32> to vector<8x128xbf16>
    %c0_12 = arith.constant 0 : index
    %c0_13 = arith.constant 0 : index
    %18 = vector.load %arg6[%c0_12, %c0_13] : memref<128x128xbf16, #tpu.memory_space<vmem>>, vector<128x128xbf16>
    %cst_14 = arith.constant dense<0.000000e+00> : vector<8x128xf32>
    %19 = tpu.matmul %17, %18, %cst_14 {dimension_numbers = #tpu.dot_dimension_numbers<[1], [0], [0], [1], [0, 0, 1, 1], [], []>} : vector<8x128xbf16>, vector<128x128xbf16>, vector<8x128xf32> -> vector<8x128xf32>
    %c0_15 = arith.constant 0 : index
    %c0_16 = arith.constant 0 : index
    %20 = vector.load %arg7[%c0_15, %c0_16] : memref<1x128xf32, #tpu.memory_space<vmem>>, vector<1x128xf32>
    %21 = vector.broadcast %20 : vector<1x128xf32> to vector<8x128xf32>
    %22 = arith.addf %19, %21 : vector<8x128xf32>
    %c0_17 = arith.constant 0 : index
    %c0_18 = arith.constant 0 : index
    %23 = vector.load %arg8[%c0_17, %c0_18] : memref<8x128xf32, #tpu.memory_space<vmem>>, vector<8x128xf32>
    tpu.vector_store %arg8[%c0_17, %c0_18], %22 {strides = array<i32>} : memref<8x128xf32, #tpu.memory_space<vmem>>, vector<8x128xf32>,
    return
  }
  func.func @transform_0(%arg0: i32) -> (i32, i32) {
    %c0_i32 = arith.constant 0 : i32
    %c0_i32_0 = arith.constant 0 : i32
    return %arg0, %c0_i32 : i32, i32
  }
  func.func @transform_1(%arg0: i32) -> (i32, i32) {
    %c0_i32 = arith.constant 0 : i32
    %c0_i32_0 = arith.constant 0 : i32
    %c0_i32_1 = arith.constant 0 : i32
    return %c0_i32, %c0_i32_0 : i32, i32
  }
  func.func @transform_2(%arg0: i32) -> (i32, i32) {
    %c0_i32 = arith.constant 0 : i32
    %c0_i32_0 = arith.constant 0 : i32
    %c0_i32_1 = arith.constant 0 : i32
    return %c0_i32, %c0_i32_0 : i32, i32
  }
  func.func @transform_3(%arg0: i32) -> (i32, i32) {
    %c0_i32 = arith.constant 0 : i32
    %c0_i32_0 = arith.constant 0 : i32
    %c0_i32_1 = arith.constant 0 : i32
    return %c0_i32, %c0_i32_0 : i32, i32
  }
  func.func @transform_4(%arg0: i32) -> (i32, i32) {
    %c0_i32 = arith.constant 0 : i32
    %c0_i32_0 = arith.constant 0 : i32
    %c0_i32_1 = arith.constant 0 : i32
    return %c0_i32, %c0_i32_0 : i32, i32
  }
  func.func @transform_5(%arg0: i32) -> (i32, i32) {
    %c0_i32 = arith.constant 0 : i32
    %c0_i32_0 = arith.constant 0 : i32
    %c0_i32_1 = arith.constant 0 : i32
    return %c0_i32, %c0_i32_0 : i32, i32
  }
  func.func @transform_6(%arg0: i32) -> (i32, i32) {
    %c0_i32 = arith.constant 0 : i32
    %c0_i32_0 = arith.constant 0 : i32
    %c0_i32_1 = arith.constant 0 : i32
    return %c0_i32, %c0_i32_0 : i32, i32
  }
  func.func @transform_7(%arg0: i32) -> (i32, i32) {
    %c0_i32 = arith.constant 0 : i32
    %c0_i32_0 = arith.constant 0 : i32
    return %arg0, %c0_i32 : i32, i32
  }
}

</mosaic_0001>

<llo_original>
// kernel: dqn_forward.1
$region0: #{dqn_forward.1}
  #allocation0 [shape = 'u32[]', space=smem, size = 0x4, offset = 0x4, fixed_abs, tag = 'smem constant byte address 0x4 - core index']
  #allocation1 [shape = 'u32[72,128]{1,0:T(1,128)}', space=vmem, size = 0x9000, scoped, tag = 'internal scratch']
  %s0 = inlined_call_operand.hbm [shape: f32[8,12], index: 0, kind: input, shape index: {}]
  %s1 = inlined_call_operand.hbm [shape: bf16[12,128], index: 1, kind: input, shape index: {}]
  %s2 = inlined_call_operand.vmem [shape: f32[1,128], index: 2, kind: input, shape index: {}]
  %s3 = inlined_call_operand.hbm [shape: bf16[128,128], index: 3, kind: input, shape index: {}]
  %s4 = inlined_call_operand.vmem [shape: f32[1,128], index: 4, kind: input, shape index: {}]
  %s5 = inlined_call_operand.hbm [shape: bf16[128,128], index: 5, kind: input, shape index: {}]
  %s6 = inlined_call_operand.vmem [shape: f32[1,128], index: 6, kind: input, shape index: {}]
  %s7 = inlined_call_operand.hbm [shape: f32[8,128], index: 7, kind: output, shape index: {}]
  %s8 = sld [smem:[#allocation0]]
  $region54: #{dqn_forward.1} parent=0
    _
  %s10 = ssub.s32 1, %s8
  %s11 = scalar_select 0, %s10, %s8
  $region1: #{dqn_forward.1} parent=0
    #allocation2 [shape = 'u8[4096]{0}', space=vmem, size = 0x1000, scoped, tag = 'input window, operand 0, single buffered']
    #allocation3 [shape = 's32[1]{0}', space=sflag, size = 0x4, scoped, tag = 'scoped memory for dqn_forward.1']
    #allocation4 [shape = 's32[1]{0}', space=sflag, size = 0x4, scoped, tag = 'scoped memory for dqn_forward.1']
    #allocation5 [shape = 'u8[4096]{0}', space=vmem, size = 0x1000, scoped, tag = 'input window, operand 1, single buffered']
    #allocation6 [shape = 's32[1]{0}', space=sflag, size = 0x4, scoped, tag = 'scoped memory for dqn_forward.1']
    #allocation7 [shape = 'u8[32768]{0}', space=vmem, size = 0x8000, scoped, tag = 'input window, operand 3, single buffered']
    #allocation8 [shape = 'u8[32768]{0}', space=vmem, size = 0x8000, scoped, tag = 'input window, operand 5, single buffered']
    #allocation9 [shape = 's32[1]{0}', space=sflag, size = 0x4, scoped, tag = 'scoped memory for dqn_forward.1']
    #allocation10 [shape = 'u8[4096]{0}', space=vmem, size = 0x1000, scoped, tag = 'output window, operand 0, single buffered']
    %12 = vsyncpa [#allocation3], 0
    %13 = vsyncpa [#allocation6], 0
    %14 = vsyncpa [#allocation9], 0
    %15 = vsyncpa [#allocation4], 0
    // Predicated region
    $region2: #{dqn_forward.1} parent=1 // pred_check
      _
    $region3: #{dqn_forward.1} parent=1 // pred_check_branch
      %17 = sbr.rel (0) target = $region5
    $region4: #{dqn_forward.1} parent=1 // pred_region
      %19 = vsyncadd [#allocation3], 0
      %s21 = sshll.u32 %s0, 4
      %s22 = int_to_ptr.hbm [resolvable:$true] %s21
      %s23 = sshll.u32 [#allocation2], 4
      %s24 = int_to_ptr.vmem [resolvable:$true] %s23
      %26 = dma.hbm_to_vmem [thread:$0]  %s22, 128, %s24, [#allocation3]
    $region5: #{dqn_forward.1} parent=1 // pred_fallthru
      _
    // Predicated region
    $region6: #{dqn_forward.1} parent=1 // pred_check
      _
    $region7: #{dqn_forward.1} parent=1 // pred_check_branch
      %28 = sbr.rel (0) target = $region9
    $region8: #{dqn_forward.1} parent=1 // pred_region
      %30 = vsyncadd [#allocation6], 0
      %s31 = sshll.u32 %s1, 4
      %s32 = int_to_ptr.hbm [resolvable:$true] %s31
      %s33 = sshll.u32 [#allocation5], 4
      %s34 = int_to_ptr.vmem [resolvable:$true] %s33
      %39 = dma.hbm_to_vmem [thread:$0]  %s32, 128, %s34, [#allocation6], 64, 64, 4
    $region9: #{dqn_forward.1} parent=1 // pred_fallthru
      _
    // Predicated region
    $region10: #{dqn_forward.1} parent=1 // pred_check
      _
    $region11: #{dqn_forward.1} parent=1 // pred_check_branch
      %41 = sbr.rel (0) target = $region13
    $region12: #{dqn_forward.1} parent=1 // pred_region
      _
    $region13: #{dqn_forward.1} parent=1 // pred_fallthru
      _
    // Predicated region
    $region14: #{dqn_forward.1} parent=1 // pred_check
      _
    $region15: #{dqn_forward.1} parent=1 // pred_check_branch
      %43 = sbr.rel (0) target = $region17
    $region16: #{dqn_forward.1} parent=1 // pred_region
      %45 = vsyncadd [#allocation6], 0
      %s46 = sshll.u32 %s3, 4
      %s47 = int_to_ptr.hbm [resolvable:$true] %s46
      %s48 = sshll.u32 [#allocation7], 4
      %s49 = int_to_ptr.vmem [resolvable:$true] %s48
      %54 = dma.hbm_to_vmem [thread:$0]  %s47, 1024, %s49, [#allocation6], 64, 64, 4
    $region17: #{dqn_forward.1} parent=1 // pred_fallthru
      _
    // Predicated region
    $region18: #{dqn_forward.1} parent=1 // pred_check
      _
    $region19: #{dqn_forward.1} parent=1 // pred_check_branch
      %56 = sbr.rel (0) target = $region21
    $region20: #{dqn_forward.1} parent=1 // pred_region
      _
    $region21: #{dqn_forward.1} parent=1 // pred_fallthru
      _
    // Predicated region
    $region22: #{dqn_forward.1} parent=1 // pred_check
      _
    $region23: #{dqn_forward.1} parent=1 // pred_check_branch
      %58 = sbr.rel (0) target = $region25
    $region24: #{dqn_forward.1} parent=1 // pred_region
      %60 = vsyncadd [#allocation9], 0
      %s61 = sshll.u32 %s5, 4
      %s62 = int_to_ptr.hbm [resolvable:$true] %s61
      %s63 = sshll.u32 [#allocation8], 4
      %s64 = int_to_ptr.vmem [resolvable:$true] %s63
      %69 = dma.hbm_to_vmem [thread:$0]  %s62, 1024, %s64, [#allocation9], 64, 64, 4
    $region25: #{dqn_forward.1} parent=1 // pred_fallthru
      _
    // Predicated region
    $region26: #{dqn_forward.1} parent=1 // pred_check
      _
    $region27: #{dqn_forward.1} parent=1 // pred_check_branch
      %71 = sbr.rel (0) target = $region29
    $region28: #{dqn_forward.1} parent=1 // pred_region
      _
    $region29: #{dqn_forward.1} parent=1 // pred_fallthru
      _
    // Predicated region
    $region30: #{dqn_forward.1} parent=1 // pred_check
      _
    $region31: #{dqn_forward.1} parent=1 // pred_check_branch
      %73 = sbr.rel (0) target = $region33
    $region32: #{dqn_forward.1} parent=1 // pred_region
      %75 = dma.done [#allocation3], 128
    $region33: #{dqn_forward.1} parent=1 // pred_fallthru
      _
    // Predicated region
    $region34: #{dqn_forward.1} parent=1 // pred_check
      _
    $region35: #{dqn_forward.1} parent=1 // pred_check_branch
      %77 = sbr.rel (0) target = $region37
    $region36: #{dqn_forward.1} parent=1 // pred_region
      %79 = dma.done [#allocation6], 128
    $region37: #{dqn_forward.1} parent=1 // pred_fallthru
      _
    // Predicated region
    $region38: #{dqn_forward.1} parent=1 // pred_check
      _
    $region39: #{dqn_forward.1} parent=1 // pred_check_branch
      %81 = sbr.rel (0) target = $region41
    $region40: #{dqn_forward.1} parent=1 // pred_region
      %83 = dma.done [#allocation6], 1024
    $region41: #{dqn_forward.1} parent=1 // pred_fallthru
      _
    // Predicated region
    $region42: #{dqn_forward.1} parent=1 // pred_check
      _
    $region43: #{dqn_forward.1} parent=1 // pred_check_branch
      %85 = sbr.rel (0) target = $region45
    $region44: #{dqn_forward.1} parent=1 // pred_region
      %87 = dma.done [#allocation9], 1024
    $region45: #{dqn_forward.1} parent=1 // pred_fallthru
      _
    %v89 = vld [vmem:[#allocation2] sm:$0xff]
    %v90 = vpack.c.bf16 %v89, %v89
    %v91 = vld [vmem:[#allocation5] sm:$0xf]
    %v92 = vld [vmem:[#allocation5 + $0x4] sm:$0x3]
    %v93 = vld [vmem:[%s2] sm:$0x1]
    %v95 = vperm.slane %v93, 0
    %v99 = vunpack.c.l.b16 %v91
    %v100 = vunpack.c.l.b16 %v92
    %v101 = vpack.c.b16 %v100, %v99
    %vm102 = vcmask 97280
    %v104 = vsel %vm102, %v90, 0
    %vm106 = vcmask 1045504
    %v108 = vsel %vm106, %v101, 0
    %110 = vmatpush.bf16.msra.mxu0 0
    %111 = vmatpush.bf16.msra.mxu0 0
    %112 = vmatpush.bf16.msra.mxu0 0
    %113 = vmatpush.bf16.msra.mxu0 0
    %114 = vmatpush.bf16.msra.mxu0 0
    %115 = vmatpush.bf16.msra.mxu0 0
    %116 = vmatpush.bf16.msra.mxu0 0
    %117 = vmatpush.bf16.msra.mxu0 %v108
    %118 = vmatmul.bf16.gmra.mxu0 %v104
    %v119 = vpop.f32.mrf.mxu0
    %v120 = vadd.f32 %v95, %v119
    %v121 = vpop.f32.mrf.mxu0
    %122 = vdwg.mxu0
    %v123 = vmax.f32 %v120, 0.0
    %v124 = vpack.c.bf16 %v123, %v123
    %v125 = vld [vmem:[#allocation7] sm:$0xf]
    %v126 = vld [vmem:[#allocation7 + $0x4] sm:$0xf]
    %v127 = vld [vmem:[#allocation7 + $0x8] sm:$0xf]
    %v128 = vld [vmem:[#allocation7 + $0xc] sm:$0xf]
    %v129 = vld [vmem:[#allocation7 + $0x10] sm:$0xf]
    %v130 = vld [vmem:[#allocation7 + $0x14] sm:$0xf]
    %v131 = vld [vmem:[#allocation7 + $0x18] sm:$0xf]
    %v132 = vld [vmem:[#allocation7 + $0x1c] sm:$0xf]
    %v133 = vld [vmem:[#allocation7 + $0x20] sm:$0xf]
    %v134 = vld [vmem:[#allocation7 + $0x24] sm:$0xf]
    %v135 = vld [vmem:[#allocation7 + $0x28] sm:$0xf]
    %v136 = vld [vmem:[#allocation7 + $0x2c] sm:$0xf]
    %v137 = vld [vmem:[#allocation7 + $0x30] sm:$0xf]
    %v138 = vld [vmem:[#allocation7 + $0x34] sm:$0xf]
    %v139 = vld [vmem:[#allocation7 + $0x38] sm:$0xf]
    %v140 = vld [vmem:[#allocation7 + $0x3c] sm:$0xf]
    %v141 = vld [vmem:[%s4] sm:$0x1]
    %v143 = vperm.slane %v141, 0
    %v161 = vunpack.c.l.b16 %v125
    %v162 = vunpack.c.l.b16 %v126
    %v163 = vunpack.c.l.b16 %v127
    %v164 = vunpack.c.l.b16 %v128
    %v165 = vunpack.c.l.b16 %v129
    %v166 = vunpack.c.l.b16 %v130
    %v167 = vunpack.c.l.b16 %v131
    %v168 = vunpack.c.l.b16 %v132
    %v169 = vunpack.c.l.b16 %v133
    %v170 = vunpack.c.l.b16 %v134
    %v171 = vunpack.c.l.b16 %v135
    %v172 = vunpack.c.l.b16 %v136
    %v173 = vunpack.c.l.b16 %v137
    %v174 = vunpack.c.l.b16 %v138
    %v175 = vunpack.c.l.b16 %v139
    %v176 = vunpack.c.l.b16 %v140
    %v177 = vpack.c.b16 %v162, %v161
    %v178 = vpack.c.b16 %v164, %v163
    %v179 = vpack.c.b16 %v166, %v165
    %v180 = vpack.c.b16 %v168, %v167
    %v181 = vpack.c.b16 %v170, %v169
    %v182 = vpack.c.b16 %v172, %v171
    %v183 = vpack.c.b16 %v174, %v173
    %v184 = vpack.c.b16 %v176, %v175
    %193 = vmatpush.bf16.msra.mxu0 %v184
    %194 = vmatpush.bf16.msra.mxu0 %v183
    %195 = vmatpush.bf16.msra.mxu0 %v182
    %196 = vmatpush.bf16.msra.mxu0 %v181
    %197 = vmatpush.bf16.msra.mxu0 %v180
    %198 = vmatpush.bf16.msra.mxu0 %v179
    %199 = vmatpush.bf16.msra.mxu0 %v178
    %200 = vmatpush.bf16.msra.mxu0 %v177
    %201 = vmatmul.bf16.gmra.mxu0 %v124
    %v202 = vpop.f32.mrf.mxu0
    %v203 = vadd.f32 %v143, %v202
    %v204 = vpop.f32.mrf.mxu0
    %205 = vdwg.mxu0
    %v206 = vmax.f32 %v203, 0.0
    %v207 = vpack.c.bf16 %v206, %v206
    %v208 = vld [vmem:[#allocation8] sm:$0xf]
    %v209 = vld [vmem:[#allocation8 + $0x4] sm:$0xf]
    %v210 = vld [vmem:[#allocation8 + $0x8] sm:$0xf]
    %v211 = vld [vmem:[#allocation8 + $0xc] sm:$0xf]
    %v212 = vld [vmem:[#allocation8 + $0x10] sm:$0xf]
    %v213 = vld [vmem:[#allocation8 + $0x14] sm:$0xf]
    %v214 = vld [vmem:[#allocation8 + $0x18] sm:$0xf]
    %v215 = vld [vmem:[#allocation8 + $0x1c] sm:$0xf]
    %v216 = vld [vmem:[#allocation8 + $0x20] sm:$0xf]
    %v217 = vld [vmem:[#allocation8 + $0x24] sm:$0xf]
    %v218 = vld [vmem:[#allocation8 + $0x28] sm:$0xf]
    %v219 = vld [vmem:[#allocation8 + $0x2c] sm:$0xf]
    %v220 = vld [vmem:[#allocation8 + $0x30] sm:$0xf]
    %v221 = vld [vmem:[#allocation8 + $0x34] sm:$0xf]
    %v222 = vld [vmem:[#allocation8 + $0x38] sm:$0xf]
    %v223 = vld [vmem:[#allocation8 + $0x3c] sm:$0xf]
    %v224 = vld [vmem:[%s6] sm:$0x1]
    %v226 = vperm.slane %v224, 0
    %v244 = vunpack.c.l.b16 %v208
    %v245 = vunpack.c.l.b16 %v209
    %v246 = vunpack.c.l.b16 %v210
    %v247 = vunpack.c.l.b16 %v211
    %v248 = vunpack.c.l.b16 %v212
    %v249 = vunpack.c.l.b16 %v213
    %v250 = vunpack.c.l.b16 %v214
    %v251 = vunpack.c.l.b16 %v215
    %v252 = vunpack.c.l.b16 %v216
    %v253 = vunpack.c.l.b16 %v217
    %v254 = vunpack.c.l.b16 %v218
    %v255 = vunpack.c.l.b16 %v219
    %v256 = vunpack.c.l.b16 %v220
    %v257 = vunpack.c.l.b16 %v221
    %v258 = vunpack.c.l.b16 %v222
    %v259 = vunpack.c.l.b16 %v223
    %v260 = vpack.c.b16 %v245, %v244
    %v261 = vpack.c.b16 %v247, %v246
    %v262 = vpack.c.b16 %v249, %v248
    %v263 = vpack.c.b16 %v251, %v250
    %v264 = vpack.c.b16 %v253, %v252
    %v265 = vpack.c.b16 %v255, %v254
    %v266 = vpack.c.b16 %v257, %v256
    %v267 = vpack.c.b16 %v259, %v258
    %276 = vmatpush.bf16.msra.mxu0 %v267
    %277 = vmatpush.bf16.msra.mxu0 %v266
    %278 = vmatpush.bf16.msra.mxu0 %v265
    %279 = vmatpush.bf16.msra.mxu0 %v264
    %280 = vmatpush.bf16.msra.mxu0 %v263
    %281 = vmatpush.bf16.msra.mxu0 %v262
    %282 = vmatpush.bf16.msra.mxu0 %v261
    %283 = vmatpush.bf16.msra.mxu0 %v260
    %284 = vmatmul.bf16.gmra.mxu0 %v207
    %v285 = vpop.f32.mrf.mxu0
    %v286 = vadd.f32 %v226, %v285
    %v287 = vpop.f32.mrf.mxu0
    %288 = vdwg.mxu0
    %289 = vst [vmem:[#allocation10] sm:$0xff] %v286
    // Predicated region
    $region46: #{dqn_forward.1} parent=1 // pred_check
      _
    $region47: #{dqn_forward.1} parent=1 // pred_check_branch
      %291 = sbr.rel (0) target = $region49
    $region48: #{dqn_forward.1} parent=1 // pred_region
      %293 = vsyncadd [#allocation4], 0
      %s295 = sshll.u32 [#allocation10], 4
      %s296 = int_to_ptr.vmem [resolvable:$true] %s295
      %s297 = sshll.u32 %s7, 4
      %s298 = int_to_ptr.hbm [resolvable:$true] %s297
      %300 = dma.vmem_to_hbm [thread:$0]  %s296, 128, %s298, [#allocation4]
    $region49: #{dqn_forward.1} parent=1 // pred_fallthru
      _
    // Predicated region
    $region50: #{dqn_forward.1} parent=1 // pred_check
      _
    $region51: #{dqn_forward.1} parent=1 // pred_check_branch
      %302 = sbr.rel (0) target = $region53
    $region52: #{dqn_forward.1} parent=1 // pred_region
      %304 = dma.done [#allocation4], 128
    $region53: #{dqn_forward.1} parent=1 // pred_fallthru
      _
    %305 = vsyncpa [#allocation3], 1
    %306 = vsyncpa [#allocation6], 1
    %307 = vsyncpa [#allocation9], 1
    %308 = vsyncpa [#allocation4], 1

</llo_original>
